<compile_context>
chip_gen: v7x
topology: tpu7x:2x2x1
jax: 0.10.0
libtpu: 0.0.40
codegen_flags: <defaults>
</compile_context>

<pallas_src>
import functools
import math

import jax
import jax.numpy as jnp
import numpy as np
from jax.experimental import pallas as pl
from jax.experimental.pallas import tpu as pltpu

C1, C2, C3 = 16, 32, 16


def wavenet_kernel(x_ref, v_ref, bias_ref, m1_ref, m2_ref, o_ref, *, d, W):
    """Fused, algebraically composed 3-layer block (pure VPU streaming).

    out = v0*x + v1*(m1 * shift(x, d)) + v2*(m2 * shift(x, 2d)) + bias
    All lane-periodic constants (m1, m2, bias) are precomputed on the host and
    stay VMEM-resident, so per-(C3,T) VALU work is just 3 mul + 3 add.
    """
    x = x_ref[...]                                   # (1, T)
    acc = v_ref[:, 0:1] * x + bias_ref[...]          # (C3, T)
    # Static-shift roll lowers to a lane slice+concat on a single (1, T) row;
    # wrap / cross-row garbage lands exactly where m1/m2 are zero because every
    # tile is a multiple of W.  (pltpu.roll would route this to the XLU, but a
    # one-row shift is already far off the (C3,T) VALU critical path.)
    if d < W:
        acc = acc + v_ref[:, 1:2] * (m1_ref[...] * jnp.roll(x, -d, axis=-1))
    if 2 * d < W:
        acc = acc + v_ref[:, 2:3] * (m2_ref[...] * jnp.roll(x, -2 * d, axis=-1))
    o_ref[...] = acc


def _pick_lane_tile(HW, W, N, max_cols=32768):
    """Pick a lane tile t such that:
       * t divides HW and is a multiple of W (row-aligned: the dilated shift
         never crosses a tile edge; masks/bias tiles are tile-invariant),
       * t is a multiple of 128 (unmasked vst) or t == HW (full extent),
       * t <= max_cols so (in + out + bias) x double-buffer stays well inside
         the default scoped-VMEM limit on v5e/v6e/v7x,
       * the grid N*(HW//t) has >= 2 steps when possible (megacore on v7x).
    """
    step = (W * 128) // math.gcd(W, 128)              # lcm(W, 128)
    cands = []
    if step <= max_cols:
        kmax = min(HW // step, max_cols // step)
        cands = [step * k for k in range(1, kmax + 1) if HW % (step * k) == 0]
    if HW <= max_cols:
        cands.append(HW)                               # full extent is legal
    if not cands:
        # Pathological W: no aligned tile fits the cap.  Fall back to the full
        # extent; the caller raises vmem_limit_bytes for this case.
        return HW
    t = max(cands)
    if N * (HW // t) < 2:                              # keep both TCs busy
        split = [c for c in cands if HW // c >= 2]
        if split:
            t = max(split)
    return t


def wavenet_forward(x, params, dilation_rate):
    """x: (N, 1, H, W) float32, NCHW like the PyTorch module."""
    w1, b1, w2, b2, w3, b3 = params
    N, Cin, H, W = x.shape
    assert Cin == 1
    d = int(dilation_rate)
    HW = H * W

    # --- host-side exact weight composition (tiny matrices, float64) --------
    w1v = np.asarray(w1, np.float64)[:, 0, 0, 0]               # (16,)
    b1n = np.asarray(b1, np.float64)
    b2n = np.asarray(b2, np.float64)
    b3n = np.asarray(b3, np.float64)
    W2a = np.asarray(w2, np.float64)[:, :, 0, 0]               # (32, 16)
    W2b = np.asarray(w2, np.float64)[:, :, 0, 1]
    W3a = np.asarray(w3, np.float64)[:, :, 0, 0]               # (16, 32)
    W3b = np.asarray(w3, np.float64)[:, :, 0, 1]

    A = W3a @ W2a
    B = W3a @ W2b + W3b @ W2a
    C = W3b @ W2b

    v0 = A @ w1v
    v1 = B @ w1v
    v2 = C @ w1v
    c0 = A @ b1n + W3a @ b2n + b3n
    c1 = B @ b1n + W3b @ b2n
    c2 = C @ b1n

    # --- tiling --------------------------------------------------------------
    t_hw = _pick_lane_tile(HW, W, N)
    grid = (N, HW // t_hw)

    # --- lane-periodic constants, precomputed once, resident in VMEM --------
    col = np.arange(t_hw) % W          # tile starts are W-aligned by design
    m1 = (col + d < W).astype(np.float64)[None, :]          # (1, t_hw)
    m2 = (col + 2 * d < W).astype(np.float64)[None, :]      # (1, t_hw)
    bias = c0[:, None] + c1[:, None] * m1 + c2[:, None] * m2  # (C3, t_hw)

    v_j = jnp.asarray(np.stack([v0, v1, v2], axis=1), jnp.float32)   # (C3, 3)
    bias_j = jnp.asarray(bias, jnp.float32)
    m1_j = jnp.asarray(m1, jnp.float32)
    m2_j = jnp.asarray(m2, jnp.float32)

    x3 = x.reshape(N, 1, HW)           # contiguous, no transpose

    const2d = lambda n, t: (0, 0)      # resident weights / masks / bias

    # VMEM budget for one grid step (x2 double-buffer).  Only the pathological
    # full-HW fallback ever needs to raise the default scoped limit.
    blk_bytes = 4 * (t_hw + 2 * C3 * t_hw + 2 * t_hw + 3 * C3)
    cp = dict(dimension_semantics=("parallel", "parallel"))
    if 2 * blk_bytes > (12 << 20):
        cp["vmem_limit_bytes"] = int(min(2 * blk_bytes + (4 << 20), 64 << 20))

    y = pl.pallas_call(
        functools.partial(wavenet_kernel, d=d, W=W),
        grid=grid,
        in_specs=[pl.BlockSpec((None, 1, t_hw), lambda n, t: (n, 0, t)),
                  pl.BlockSpec((C3, 3), const2d),
                  pl.BlockSpec((C3, t_hw), const2d),
                  pl.BlockSpec((1, t_hw), const2d),
                  pl.BlockSpec((1, t_hw), const2d)],
        out_specs=pl.BlockSpec((None, C3, t_hw), lambda n, t: (n, 0, t)),
        out_shape=jax.ShapeDtypeStruct((N, C3, HW), jnp.float32),
        compiler_params=pltpu.CompilerParams(**cp),
    )(x3, v_j, bias_j, m1_j, m2_j)

    # (N, C3, H*W) -> (N, C3, H, W): contiguous reshape, no HBM transpose pass.
    return y.reshape(N, C3, H, W)


def ref_forward(x, params, d):
    """Pure-JAX reference mirroring the PyTorch forward exactly."""
    w1, b1, w2, b2, w3, b3 = params
    W = x.shape[-1]
    y1 = jnp.einsum('oi,nihw->nohw', w1[:, :, 0, 0], x) + b1[None, :, None, None]
    y1p = jnp.pad(y1, ((0, 0), (0, 0), (0, 0), (0, d)))
    y2 = (jnp.einsum('oi,nihw->nohw', w2[:, :, 0, 0], y1p[..., :W])
          + jnp.einsum('oi,nihw->nohw', w2[:, :, 0, 1], y1p[..., d:d + W])
          + b2[None, :, None, None])
    y2p = jnp.pad(y2, ((0, 0), (0, 0), (0, 0), (0, d)))
    y3 = (jnp.einsum('oi,nihw->nohw', w3[:, :, 0, 0], y2p[..., :W])
          + jnp.einsum('oi,nihw->nohw', w3[:, :, 0, 1], y2p[..., d:d + W])
          + b3[None, :, None, None])
    return y3


if __name__ == "__main__":
    key = jax.random.PRNGKey(0)
    ks = jax.random.split(key, 7)

    N, H, W = 2, 4, 16
    dilation_rate = 2

    x = jax.random.normal(ks[0], (N, 1, H, W), jnp.float32)
    w1 = 0.1 * jax.random.normal(ks[1], (C1, 1, 1, 1), jnp.float32)
    b1 = 0.1 * jax.random.normal(ks[2], (C1,), jnp.float32)
    w2 = 0.1 * jax.random.normal(ks[3], (C2, C1, 1, 2), jnp.float32)
    b2 = 0.1 * jax.random.normal(ks[4], (C2,), jnp.float32)
    w3 = 0.1 * jax.random.normal(ks[5], (C3, C2, 1, 2), jnp.float32)
    b3 = 0.1 * jax.random.normal(ks[6], (C3,), jnp.float32)
    params = (w1, b1, w2, b2, w3, b3)

    out = wavenet_forward(x, params, dilation_rate)
    out = jax.block_until_ready(out)

    ref = ref_forward(x, params, dilation_rate)
    assert out.shape == (N, C3, H, W), out.shape
    np.testing.assert_allclose(np.asarray(out), np.asarray(ref),
                               rtol=1e-4, atol=1e-5)
    print("KERNEL_OK")
</pallas_src>

<mosaic_0001>
module attributes {stable_mosaic.version = 11 : i64} {
  func.func @wavenet_kernel(%arg0: i32, %arg1: i32, %arg2: memref<1x1x64xf32, #tpu.memory_space<vmem>>, %arg3: memref<16x3xf32, #tpu.memory_space<vmem>>, %arg4: memref<16x64xf32, #tpu.memory_space<vmem>>, %arg5: memref<1x64xf32, #tpu.memory_space<vmem>>, %arg6: memref<1x64xf32, #tpu.memory_space<vmem>>, %arg7: memref<1x16x64xf32, #tpu.memory_space<vmem>>) attributes {dimension_semantics = [#tpu.dimension_semantics<parallel>, #tpu.dimension_semantics<parallel>], iteration_bounds = array<i64: 2, 1>, scalar_prefetch = 0 : i64, scratch_operands = 0 : i64, tpu.core_type = #tpu.core_type<tc>, window_params = [{transform_indices = @transform_0, window_bounds = array<i64: 1, 1, 64>}, {pipeline_mode = #tpu.pipeline_mode<synchronous>, transform_indices = @transform_1, window_bounds = array<i64: 16, 3>}, {pipeline_mode = #tpu.pipeline_mode<synchronous>, transform_indices = @transform_2, window_bounds = array<i64: 16, 64>}, {pipeline_mode = #tpu.pipeline_mode<synchronous>, transform_indices = @transform_3, window_bounds = array<i64: 1, 64>}, {pipeline_mode = #tpu.pipeline_mode<synchronous>, transform_indices = @transform_4, window_bounds = array<i64: 1, 64>}, {transform_indices = @transform_5, window_bounds = array<i64: 1, 16, 64>}]} {
    %c0 = arith.constant 0 : index
    %c0_0 = arith.constant 0 : index
    %c0_1 = arith.constant 0 : index
    %0 = vector.load %arg2[%c0, %c0_0, %c0_1] : memref<1x1x64xf32, #tpu.memory_space<vmem>>, vector<1x1x64xf32>
    %1 = vector.shape_cast %0 : vector<1x1x64xf32> to vector<1x64xf32>
    %c0_2 = arith.constant 0 : index
    %c0_3 = arith.constant 0 : index
    %2 = vector.load %arg3[%c0_2, %c0_3] : memref<16x3xf32, #tpu.memory_space<vmem>>, vector<16x1xf32>
    %3 = vector.broadcast %2 : vector<16x1xf32> to vector<16x64xf32>
    %4 = vector.broadcast %1 : vector<1x64xf32> to vector<16x64xf32>
    %5 = arith.mulf %3, %4 : vector<16x64xf32>
    %c0_4 = arith.constant 0 : index
    %c0_5 = arith.constant 0 : index
    %6 = vector.load %arg4[%c0_4, %c0_5] : memref<16x64xf32, #tpu.memory_space<vmem>>, vector<16x64xf32>
    %7 = arith.addf %5, %6 : vector<16x64xf32>
    %c0_6 = arith.constant 0 : index
    %c1 = arith.constant 1 : index
    %8 = vector.load %arg3[%c0_6, %c1] : memref<16x3xf32, #tpu.memory_space<vmem>>, vector<16x1xf32>
    %c0_7 = arith.constant 0 : index
    %c0_8 = arith.constant 0 : index
    %9 = vector.load %arg5[%c0_7, %c0_8] : memref<1x64xf32, #tpu.memory_space<vmem>>, vector<1x64xf32>
    %10 = vector.extract_strided_slice %1 {offsets = [0, 2], sizes = [1, 62], strides = [1, 1]} : vector<1x64xf32> to vector<1x62xf32>
    %11 = vector.extract_strided_slice %1 {offsets = [0, 0], sizes = [1, 2], strides = [1, 1]} : vector<1x64xf32> to vector<1x2xf32>
    %12 = tpu.concatenate %10, %11 in 1 : vector<1x62xf32>, vector<1x2xf32> -> vector<1x64xf32>
    %13 = arith.mulf %9, %12 : vector<1x64xf32>
    %14 = vector.broadcast %8 : vector<16x1xf32> to vector<16x64xf32>
    %15 = vector.broadcast %13 : vector<1x64xf32> to vector<16x64xf32>
    %16 = arith.mulf %14, %15 : vector<16x64xf32>
    %17 = arith.addf %7, %16 : vector<16x64xf32>
    %c0_9 = arith.constant 0 : index
    %c2 = arith.constant 2 : index
    %18 = vector.load %arg3[%c0_9, %c2] : memref<16x3xf32, #tpu.memory_space<vmem>>, vector<16x1xf32>
    %c0_10 = arith.constant 0 : index
    %c0_11 = arith.constant 0 : index
    %19 = vector.load %arg6[%c0_10, %c0_11] : memref<1x64xf32, #tpu.memory_space<vmem>>, vector<1x64xf32>
    %20 = vector.extract_strided_slice %1 {offsets = [0, 4], sizes = [1, 60], strides = [1, 1]} : vector<1x64xf32> to vector<1x60xf32>
    %21 = vector.extract_strided_slice %1 {offsets = [0, 0], sizes = [1, 4], strides = [1, 1]} : vector<1x64xf32> to vector<1x4xf32>
    %22 = tpu.concatenate %20, %21 in 1 : vector<1x60xf32>, vector<1x4xf32> -> vector<1x64xf32>
    %23 = arith.mulf %19, %22 : vector<1x64xf32>
    %24 = vector.broadcast %18 : vector<16x1xf32> to vector<16x64xf32>
    %25 = vector.broadcast %23 : vector<1x64xf32> to vector<16x64xf32>
    %26 = arith.mulf %24, %25 : vector<16x64xf32>
    %27 = arith.addf %17, %26 : vector<16x64xf32>
    %c0_12 = arith.constant 0 : index
    %c0_13 = arith.constant 0 : index
    %c0_14 = arith.constant 0 : index
    %28 = vector.load %arg7[%c0_12, %c0_13, %c0_14] : memref<1x16x64xf32, #tpu.memory_space<vmem>>, vector<1x16x64xf32>
    %29 = vector.shape_cast %28 : vector<1x16x64xf32> to vector<16x64xf32>
    %30 = vector.shape_cast %27 : vector<16x64xf32> to vector<1x16x64xf32>
    tpu.vector_store %arg7[%c0_12, %c0_13, %c0_14], %30 {strides = array<i32>} : memref<1x16x64xf32, #tpu.memory_space<vmem>>, vector<1x16x64xf32>,
    return
  }
  func.func @transform_0(%arg0: i32, %arg1: i32) -> (i32, i32, i32) {
    %c0_i32 = arith.constant 0 : i32
    %c0_i32_0 = arith.constant 0 : i32
    return %arg0, %c0_i32, %arg1 : i32, i32, i32
  }
  func.func @transform_1(%arg0: i32, %arg1: i32) -> (i32, i32) {
    %c0_i32 = arith.constant 0 : i32
    %c0_i32_0 = arith.constant 0 : i32
    %c0_i32_1 = arith.constant 0 : i32
    return %c0_i32, %c0_i32_0 : i32, i32
  }
  func.func @transform_2(%arg0: i32, %arg1: i32) -> (i32, i32) {
    %c0_i32 = arith.constant 0 : i32
    %c0_i32_0 = arith.constant 0 : i32
    %c0_i32_1 = arith.constant 0 : i32
    return %c0_i32, %c0_i32_0 : i32, i32
  }
  func.func @transform_3(%arg0: i32, %arg1: i32) -> (i32, i32) {
    %c0_i32 = arith.constant 0 : i32
    %c0_i32_0 = arith.constant 0 : i32
    %c0_i32_1 = arith.constant 0 : i32
    return %c0_i32, %c0_i32_0 : i32, i32
  }
  func.func @transform_4(%arg0: i32, %arg1: i32) -> (i32, i32) {
    %c0_i32 = arith.constant 0 : i32
    %c0_i32_0 = arith.constant 0 : i32
    %c0_i32_1 = arith.constant 0 : i32
    return %c0_i32, %c0_i32_0 : i32, i32
  }
  func.func @transform_5(%arg0: i32, %arg1: i32) -> (i32, i32, i32) {
    %c0_i32 = arith.constant 0 : i32
    %c0_i32_0 = arith.constant 0 : i32
    return %arg0, %c0_i32, %arg1 : i32, i32, i32
  }
}

</mosaic_0001>

<llo_original>
// kernel: tpu_custom_call.1
$region0: #{tpu_custom_call.1}
  #allocation0 [shape = 'u32[]', space=smem, size = 0x4, offset = 0x4, fixed_abs, tag = 'smem constant byte address 0x4 - core index']
  #allocation1 [shape = 'u32[144,128]{1,0:T(1,128)}', space=vmem, size = 0x12000, scoped, tag = 'internal scratch']
  %s0 = inlined_call_operand.vmem [shape: f32[2,1,64], index: 0, kind: input, shape index: {}]
  %s1 = inlined_call_operand.vmem [shape: f32[16,3], index: 1, kind: input, shape index: {}]
  %s2 = inlined_call_operand.vmem [shape: f32[16,64], index: 2, kind: input, shape index: {}]
  %s3 = inlined_call_operand.vmem [shape: f32[1,64], index: 3, kind: input, shape index: {}]
  %s4 = inlined_call_operand.vmem [shape: f32[1,64], index: 4, kind: input, shape index: {}]
  %s5 = inlined_call_operand.hbm [shape: f32[2,16,64], index: 5, kind: output, shape index: {}]
  %s6 = sld [smem:[#allocation0]]
  $region53: #{tpu_custom_call.1} parent=0
    _
  %s8 = ssub.s32 1, %s6
  %s9 = scalar_select 0, %s8, %s6
  $region1: #{tpu_custom_call.1} parent=0
    #allocation2 [shape = 'u8[16384]{0}', space=vmem, size = 0x4000, scoped, tag = 'output window, operand 0']
    #allocation3 [shape = 's32[2]{0}', space=sflag, size = 0x8, scoped, tag = 'scoped memory for tpu_custom_call.1']
    %10 = vsyncpa [#allocation3], 0
    %s11 = scalar_lea.sflag [#allocation3], 1
    %12 = vsyncpa %s11, 0
    loop: start=0, step=1, limit=4
    $region2: #{tpu_custom_call.1} parent=1 // loop_pre_header
      _
    $region3: #{tpu_custom_call.1} parent=1 // loop_header
      %s14 = sphi 0, %s18
      %p15 = scmp.ge.s32.totalorder %s14, 4
      %s21 = sphi 0, %s33
      %s22 = sphi 0, %s29
      %s23 = sphi 0, %s21
      %s24 = sphi 0, %s22
      %s25 = sphi 0, %s23
      %s26 = sphi 0, %s24
      %s38 = sphi 0, %s40
      %s41 = sphi 0, %s38
      %s42 = sphi 0, %s41
      %s58 = sphi 0, %s42
      %s62 = sphi 0, %s62
      %s64 = sphi 0, %s62
      %s65 = sphi 0, %s64
      %s79 = sphi 0, %s65
      %s83 = sphi 0, %s83
      %s85 = sphi 0, %s83
      %s86 = sphi 0, %s85
      %s100 = sphi 0, %s86
      %s104 = sphi 0, %s104
      %s106 = sphi 0, %s104
      %s107 = sphi 0, %s106
      %s121 = sphi 0, %s107
      %s125 = sphi 0, %s125
      %s127 = sphi 0, %s125
      %s128 = sphi 0, %s127
      %s142 = sphi 0, %s128
      %s150 = sphi 0, %s152
      %s153 = sphi 0, %s150
      %s154 = sphi 0, %s153
      %s170 = sphi 0, %s154
    $region4: #{tpu_custom_call.1} parent=1 // loop_header_branch
      %17 = sbr.rel (%p15) target = $region8
    $region5: #{tpu_custom_call.1} parent=1 // loop_body
      %s19 = ssub.s32 %s14, 1
      %s20 = ssub.s32 %s14, 2
      %s27 = sadd.s32 1, %s22
      %p28 = scmp.ge.s32.totalorder %s27, 1
      %s29 = scalar_select %p28, 0, %s27
      %s30 = sadd.s32 1, %s21
      %s31 = scalar_select %p28, %s30, %s21
      %p32 = scmp.ge.s32.totalorder %s31, 2
      %s33 = scalar_select %p32, 0, %s31
      %s34 = ssub.s32 %s21, %s33
      %s35 = ssub.s32 %s22, %s29
      %s36 = sor.u32 %s34, %s35
      %p37 = scmp.eq.s32.totalorder %s36, 0
      %s39 = sadd.s32 %s38, 1
      %s40 = scalar_select %p37, %s38, %s39
      %p43 = pneg %p37
      %p44 = scmp.eq.s32.totalorder %s14, 1
      %p45 = por %p43, %p44
      %p46 = scmp.ne.s32.totalorder %s38, %s41
      %p47 = scmp.eq.s32.totalorder %s14, 0
      %p48 = por %p46, %p47
      %p49 = scmp.ne.s32.totalorder %s38, %s41
      %p50 = scmp.eq.s32.totalorder %s19, 1
      %p51 = por %p49, %p50
      %p52 = scmp.ne.s32.totalorder %s41, %s42
      %p53 = scmp.eq.s32.totalorder %s19, 0
      %p54 = por %p52, %p53
      %p55 = scmp.ne.s32.totalorder %s41, %s42
      %p56 = scmp.eq.s32.totalorder %s20, 1
      %p57 = por %p55, %p56
      %p59 = scmp.ne.s32.totalorder %s42, %s58
      %p60 = scmp.eq.s32.totalorder %s20, 0
      %p61 = por %p59, %p60
      %s63 = sadd.s32 %s62, 1
      %p66 = scmp.eq.s32.totalorder %s14, 1
      %p67 = scmp.ne.s32.totalorder %s62, %s64
      %p68 = scmp.eq.s32.totalorder %s14, 0
      %p69 = por %p67, %p68
      %p70 = scmp.ne.s32.totalorder %s62, %s64
      %p71 = scmp.eq.s32.totalorder %s19, 1
      %p72 = por %p70, %p71
      %p73 = scmp.ne.s32.totalorder %s64, %s65
      %p74 = scmp.eq.s32.totalorder %s19, 0
      %p75 = por %p73, %p74
      %p76 = scmp.ne.s32.totalorder %s64, %s65
      %p77 = scmp.eq.s32.totalorder %s20, 1
      %p78 = por %p76, %p77
      %p80 = scmp.ne.s32.totalorder %s65, %s79
      %p81 = scmp.eq.s32.totalorder %s20, 0
      %p82 = por %p80, %p81
      %s84 = sadd.s32 %s83, 1
      %p87 = scmp.eq.s32.totalorder %s14, 1
      %p88 = scmp.ne.s32.totalorder %s83, %s85
      %p89 = scmp.eq.s32.totalorder %s14, 0
      %p90 = por %p88, %p89
      %p91 = scmp.ne.s32.totalorder %s83, %s85
      %p92 = scmp.eq.s32.totalorder %s19, 1
      %p93 = por %p91, %p92
      %p94 = scmp.ne.s32.totalorder %s85, %s86
      %p95 = scmp.eq.s32.totalorder %s19, 0
      %p96 = por %p94, %p95
      %p97 = scmp.ne.s32.totalorder %s85, %s86
      %p98 = scmp.eq.s32.totalorder %s20, 1
      %p99 = por %p97, %p98
      %p101 = scmp.ne.s32.totalorder %s86, %s100
      %p102 = scmp.eq.s32.totalorder %s20, 0
      %p103 = por %p101, %p102
      %s105 = sadd.s32 %s104, 1
      %p108 = scmp.eq.s32.totalorder %s14, 1
      %p109 = scmp.ne.s32.totalorder %s104, %s106
      %p110 = scmp.eq.s32.totalorder %s14, 0
      %p111 = por %p109, %p110
      %p112 = scmp.ne.s32.totalorder %s104, %s106
      %p113 = scmp.eq.s32.totalorder %s19, 1
      %p114 = por %p112, %p113
      %p115 = scmp.ne.s32.totalorder %s106, %s107
      %p116 = scmp.eq.s32.totalorder %s19, 0
      %p117 = por %p115, %p116
      %p118 = scmp.ne.s32.totalorder %s106, %s107
      %p119 = scmp.eq.s32.totalorder %s20, 1
      %p120 = por %p118, %p119
      %p122 = scmp.ne.s32.totalorder %s107, %s121
      %p123 = scmp.eq.s32.totalorder %s20, 0
      %p124 = por %p122, %p123
      %s126 = sadd.s32 %s125, 1
      %p129 = scmp.eq.s32.totalorder %s14, 1
      %p130 = scmp.ne.s32.totalorder %s125, %s127
      %p131 = scmp.eq.s32.totalorder %s14, 0
      %p132 = por %p130, %p131
      %p133 = scmp.ne.s32.totalorder %s125, %s127
      %p134 = scmp.eq.s32.totalorder %s19, 1
      %p135 = por %p133, %p134
      %p136 = scmp.ne.s32.totalorder %s127, %s128
      %p137 = scmp.eq.s32.totalorder %s19, 0
      %p138 = por %p136, %p137
      %p139 = scmp.ne.s32.totalorder %s127, %s128
      %p140 = scmp.eq.s32.totalorder %s20, 1
      %p141 = por %p139, %p140
      %p143 = scmp.ne.s32.totalorder %s128, %s142
      %p144 = scmp.eq.s32.totalorder %s20, 0
      %p145 = por %p143, %p144
      %s146 = ssub.s32 %s21, %s33
      %s147 = ssub.s32 %s22, %s29
      %s148 = sor.u32 %s146, %s147
      %p149 = scmp.eq.s32.totalorder %s148, 0
      %s151 = sadd.s32 %s150, 1
      %s152 = scalar_select %p149, %s150, %s151
      %p155 = pneg %p149
      %p156 = scmp.eq.s32.totalorder %s14, 1
      %p157 = por %p155, %p156
      %p158 = scmp.ne.s32.totalorder %s150, %s153
      %p159 = scmp.eq.s32.totalorder %s14, 0
      %p160 = por %p158, %p159
      %p161 = scmp.ne.s32.totalorder %s150, %s153
      %p162 = scmp.eq.s32.totalorder %s19, 1
      %p163 = por %p161, %p162
      %p164 = scmp.ne.s32.totalorder %s153, %s154
      %p165 = scmp.eq.s32.totalorder %s19, 0
      %p166 = por %p164, %p165
      %p167 = scmp.ne.s32.totalorder %s153, %s154
      %p168 = scmp.eq.s32.totalorder %s20, 1
      %p169 = por %p167, %p168
      %p171 = scmp.ne.s32.totalorder %s154, %s170
      %p172 = scmp.eq.s32.totalorder %s20, 0
      %p173 = por %p171, %p172
      %p174 = scmp.le.s32.totalorder 1, %s14
      %p175 = scmp.lt.s32.totalorder %s14, 3
      %p176 = pnand %p174, %p175
      %p177 = pneg %p176
      // Predicated region
      $region9: #{tpu_custom_call.1} parent=5 // pred_check
        _
      $region10: #{tpu_custom_call.1} parent=5 // pred_check_branch
        %179 = sbr.rel (%p176) target = $region12
      $region11: #{tpu_custom_call.1} parent=5 // pred_region
        %s180 = ssub.s32 %s14, 1
        // Predicated region
        $region13: #{tpu_custom_call.1} parent=11 // pred_check
          %p181 = pneg %p75
        $region14: #{tpu_custom_call.1} parent=11 // pred_check_branch
          %183 = sbr.rel (%p181) target = $region16
        $region15: #{tpu_custom_call.1} parent=11 // pred_region
          _
        $region16: #{tpu_custom_call.1} parent=11 // pred_fallthru
          _
        // Predicated region
        $region17: #{tpu_custom_call.1} parent=11 // pred_check
          %p184 = pneg %p96
        $region18: #{tpu_custom_call.1} parent=11 // pred_check_branch
          %186 = sbr.rel (%p184) target = $region20
        $region19: #{tpu_custom_call.1} parent=11 // pred_region
          _
        $region20: #{tpu_custom_call.1} parent=11 // pred_fallthru
          _
        // Predicated region
        $region21: #{tpu_custom_call.1} parent=11 // pred_check
          %p187 = pneg %p117
        $region22: #{tpu_custom_call.1} parent=11 // pred_check_branch
          %189 = sbr.rel (%p187) target = $region24
        $region23: #{tpu_custom_call.1} parent=11 // pred_region
          _
        $region24: #{tpu_custom_call.1} parent=11 // pred_fallthru
          _
        // Predicated region
        $region25: #{tpu_custom_call.1} parent=11 // pred_check
          %p190 = pneg %p138
        $region26: #{tpu_custom_call.1} parent=11 // pred_check_branch
          %192 = sbr.rel (%p190) target = $region28
        $region27: #{tpu_custom_call.1} parent=11 // pred_region
          _
        $region28: #{tpu_custom_call.1} parent=11 // pred_fallthru
          _
      $region12: #{tpu_custom_call.1} parent=5 // pred_fallthru
        _
      %p193 = scmp.lt.s32.totalorder %s14, 2
      // Predicated region
      $region29: #{tpu_custom_call.1} parent=5 // pred_check
        %p194 = pneg %p193
      $region30: #{tpu_custom_call.1} parent=5 // pred_check_branch
        %196 = sbr.rel (%p194) target = $region32
      $region31: #{tpu_custom_call.1} parent=5 // pred_region
        // Predicated region
        $region33: #{tpu_custom_call.1} parent=31 // pred_check
          %p197 = pneg %p48
        $region34: #{tpu_custom_call.1} parent=31 // pred_check_branch
          %199 = sbr.rel (%p197) target = $region36
        $region35: #{tpu_custom_call.1} parent=31 // pred_region
          %p200 = scmp.lt.s32.totalorder %s21, 1
          %s201 = scalar_select %p200, %s21, 1
          %p202 = scmp.lt.s32.totalorder %s22, 0
          %s203 = scalar_select %p202, %s22, 0
          %s204 = sadd.s32 %s203, %s201
          %s205 = scalar_lea.vmem %s0, %s204
        $region36: #{tpu_custom_call.1} parent=31 // pred_fallthru
          _
      $region32: #{tpu_custom_call.1} parent=5 // pred_fallthru
        _
      %p206 = scmp.le.s32.totalorder 1, %s14
      %p207 = scmp.lt.s32.totalorder %s14, 3
      %p208 = pnand %p206, %p207
      %p209 = pneg %p208
      // Predicated region
      $region37: #{tpu_custom_call.1} parent=5 // pred_check
        _
      $region38: #{tpu_custom_call.1} parent=5 // pred_check_branch
        %211 = sbr.rel (%p208) target = $region40
      $region39: #{tpu_custom_call.1} parent=5 // pred_region
        %s212 = ssub.s32 %s14, 1
        %p213 = scmp.lt.s32.totalorder %s23, 1
        %s214 = scalar_select %p213, %s23, 1
        %p215 = scmp.lt.s32.totalorder %s24, 0
        %s216 = scalar_select %p215, %s24, 0
        %s217 = sadd.s32 %s216, %s214
        %s218 = scalar_lea.vmem %s0, %s217
        %p219 = pneg %p54
        %p220 = pneg %p51
        %p221 = pneg %p75
        %p222 = pneg %p72
        %p223 = pneg %p96
        %p224 = pneg %p93
        %p225 = pneg %p117
        %p226 = pneg %p114
        %p227 = pneg %p138
        %p228 = pneg %p135
        %p229 = pneg %p166
        %p230 = pneg %p163
        %s231 = sand.u32 %s153, 1
        %s232 = scalar_lea.sflag [#allocation3], %s231
        %s233 = sand.u32 %s153, 1
        %s234 = smul.addr %s233, 16
        %s235 = scalar_lea.vmem [#allocation2], %s234
        %p236 = scmp.lt.s32.totalorder %s23, 1
        %s237 = scalar_select %p236, %s23, 1
        %p238 = scmp.lt.s32.totalorder %s24, 0
        %s239 = scalar_select %p238, %s24, 0
        %s240 = sadd.s32 %s239, %s237
        %s241 = scalar_lea.vmem %s0, %s240
        %v242 = vld [vmem:[%s241] sm:$0x1]
        %v243 = vld [vmem:[%s1] sm:$0xff]
        %v244 = vld [vmem:[%s1 + $0x8] sm:$0xff]
        %246 = vset.pattern.permute.xlu0 0
        %247 = vperm.xlu0 %246, %v243
        %v248 = vpop.permute.xlu0 %247
        %251 = vset.pattern.permute.xlu0 0
        %252 = vperm.xlu0 %251, %v244
        %v253 = vpop.permute.xlu0 %252
        %v256 = vlaneseq
        %v257 = vshrl.u32 %v256, 7
        %v258 = vsub.s32 0, %v257
        %v259 = vrot.slane %v242, %v258
        %v261 = vmul.f32 %v248, %v259
        %v262 = vmul.f32 %v253, %v259
        %v263 = vld [vmem:[%s2] sm:$0xff]
        %v264 = vld [vmem:[%s2 + $0x8] sm:$0xff]
        %v265 = vadd.f32 %v261, %v263
        %v266 = vadd.f32 %v262, %v264
        %v267 = vld [vmem:[%s3] sm:$0x1]
        %268 = vrot.lane.b32.xlu0 %v259, 126
        %v269 = vpop.permute.xlu0 %268
        %271 = vrot.lane.b32.xlu0 %v259, 62
        %v272 = vpop.permute.xlu0 %271
        %vm274 = vcmask 506880
        %v275 = vsel %vm274, %v269, %v272
        %v276 = vmul.f32 %v267, %v275
        %277 = vset.pattern.permute.xlu0 1
        %278 = vperm.xlu0 %277, %v243
        %v279 = vpop.permute.xlu0 %278
        %281 = vset.pattern.permute.xlu0 1
        %282 = vperm.xlu0 %281, %v244
        %v283 = vpop.permute.xlu0 %282
        %v286 = vlaneseq
        %v287 = vshrl.u32 %v286, 7
        %v288 = vsub.s32 0, %v287
        %v289 = vrot.slane %v276, %v288
        %v291 = vmul.f32 %v279, %v289
        %v292 = vmul.f32 %v283, %v289
        %v293 = vadd.f32 %v265, %v291
        %v294 = vadd.f32 %v266, %v292
        %v295 = vld [vmem:[%s4] sm:$0x1]
        %296 = vrot.lane.b32.xlu0 %v259, 124
        %v297 = vpop.permute.xlu0 %296
        %299 = vrot.lane.b32.xlu0 %v259, 60
        %v300 = vpop.permute.xlu0 %299
        %vm302 = vcmask 490496
        %v303 = vsel %vm302, %v297, %v300
        %v304 = vmul.f32 %v295, %v303
        %305 = vset.pattern.permute.xlu0 2
        %306 = vperm.xlu0 %305, %v243
        %v307 = vpop.permute.xlu0 %306
        %309 = vset.pattern.permute.xlu0 2
        %310 = vperm.xlu0 %309, %v244
        %v311 = vpop.permute.xlu0 %310
        %v314 = vlaneseq
        %v315 = vshrl.u32 %v314, 7
        %v316 = vsub.s32 0, %v315
        %v317 = vrot.slane %v304, %v316
        %v319 = vmul.f32 %v307, %v317
        %v320 = vmul.f32 %v311, %v317
        %v321 = vadd.f32 %v293, %v319
        %v322 = vadd.f32 %v294, %v320
        %vm323 = vcmask 523264
        %324 = vst.msk [vmem:[%s235] sm:$0xff] %vm323, %v321
        %325 = vst.msk [vmem:[%s235 + $0x8] sm:$0xff] %vm323, %v322
        %s326 = sand.u32 %s153, 1
        %s327 = scalar_lea.sflag [#allocation3], %s326
        %s328 = sand.u32 %s153, 1
        %s329 = smul.addr %s328, 16
        %s330 = scalar_lea.vmem [#allocation2], %s329
        // Predicated region
        $region41: #{tpu_custom_call.1} parent=39 // pred_check
          %p331 = pneg %p163
        $region42: #{tpu_custom_call.1} parent=39 // pred_check_branch
          %333 = sbr.rel (%p331) target = $region44
        $region43: #{tpu_custom_call.1} parent=39 // pred_region
          %s335 = ssub.s32 256, 256
          %336 = vsyncadd %s327, %s335
          %s337 = smul.addr %s23, 2
          %s338 = sadd.s32 %s24, %s337
          %s339 = smul.addr %s338, 128
          %s340 = scalar_lea.hbm %s5, %s339
          %s341 = sshll.u32 %s330, 4
          %s342 = int_to_ptr.vmem [resolvable:$true] %s341
          %347 = dma.vmem_to_hbm [thread:$0]  %s342, 256, %s340, %s327, 128, 128, 8
        $region44: #{tpu_custom_call.1} parent=39 // pred_fallthru
          _
      $region40: #{tpu_custom_call.1} parent=5 // pred_fallthru
        _
      %p348 = scmp.le.s32.totalorder 2, %s14
      // Predicated region
      $region45: #{tpu_custom_call.1} parent=5 // pred_check
        %p349 = pneg %p348
      $region46: #{tpu_custom_call.1} parent=5 // pred_check_branch
        %351 = sbr.rel (%p349) target = $region48
      $region47: #{tpu_custom_call.1} parent=5 // pred_region
        %s352 = ssub.s32 %s14, 2
        // Predicated region
        $region49: #{tpu_custom_call.1} parent=47 // pred_check
          %p353 = pneg %p169
        $region50: #{tpu_custom_call.1} parent=47 // pred_check_branch
          %355 = sbr.rel (%p353) target = $region52
        $region51: #{tpu_custom_call.1} parent=47 // pred_region
          %s356 = sand.u32 %s154, 1
          %s357 = scalar_lea.sflag [#allocation3], %s356
          %s358 = sand.u32 %s154, 1
          %s359 = smul.addr %s358, 16
          %s360 = scalar_lea.vmem [#allocation2], %s359
          %361 = dma.done %s357, 256
        $region52: #{tpu_custom_call.1} parent=47 // pred_fallthru
          _
      $region48: #{tpu_custom_call.1} parent=5 // pred_fallthru
        _
    $region6: #{tpu_custom_call.1} parent=1 // loop_footer
      %s18 = sadd.s32 1, %s14
    $region7: #{tpu_custom_call.1} parent=1 // loop_footer_branch
      %13 = sbr.rel target = $region3
    $region8: #{tpu_custom_call.1} parent=1 // loop_exit
      _
    %362 = vsyncpa [#allocation3], 1
    %s363 = scalar_lea.sflag [#allocation3], 1
    %364 = vsyncpa %s363, 1

</llo_original>
